<compile_context>
chip_gen: v6e
topology: v6e:2x2x1
jax: 0.10.0
libtpu: 0.0.40
codegen_flags: <defaults>
</compile_context>

<pallas_src>
import functools

import numpy as np
import jax
import jax.numpy as jnp
from jax.experimental import pallas as pl
from jax.experimental.pallas import tpu as pltpu


# ----------------------------------------------------------------------------
# Host-side (numpy) weight construction: crop + antialiased bicubic resize as a
# single dense linear map per axis. Vectorized (no per-element Python loop).
# ----------------------------------------------------------------------------
def _cubic(x, a=-0.5):
    ax = np.abs(x)
    return np.where(
        ax <= 1.0,
        (a + 2.0) * ax ** 3 - (a + 3.0) * ax ** 2 + 1.0,
        np.where(ax < 2.0, a * ax ** 3 - 5.0 * a * ax ** 2 + 8.0 * a * ax - 4.0 * a, 0.0),
    )


def crop_resize_weights(in_size: int, offset: int, patch_size: int, out_size: int) -> np.ndarray:
    """(out_size, in_size) matrix: crop [offset, offset+patch_size) of an axis of
    length in_size, then antialiased bicubic resize to out_size (replicate-pad
    at the patch edges, torchvision-style)."""
    scale = patch_size / out_size
    support_scale = max(scale, 1.0)          # antialias: widen kernel when downscaling
    support = 2.0 * support_scale            # bicubic support = 2
    centers = (np.arange(out_size, dtype=np.float64) + 0.5) * scale - 0.5          # (S,)
    ntaps = int(np.ceil(2.0 * support)) + 3  # extra taps have |dist| >= 2 -> weight 0
    j = np.floor(centers - support).astype(np.int64)[:, None] + np.arange(ntaps)[None, :]
    w = _cubic((j - centers[:, None]) / support_scale)                              # (S, ntaps)
    jc = np.clip(j, 0, patch_size - 1) + offset      # replicate inside patch, shift by crop
    W = np.zeros((out_size, in_size), dtype=np.float64)
    rows = np.repeat(np.arange(out_size), ntaps)
    np.add.at(W, (rows, jc.ravel()), w.ravel())
    s = W.sum(axis=1, keepdims=True)
    W = W / np.where(s == 0.0, 1.0, s)
    return W.astype(np.float32)


def rand_log_uniform(low: float, high: float, rng: np.random.RandomState) -> float:
    return float(np.exp(rng.uniform(np.log(low), np.log(high))))


# ----------------------------------------------------------------------------
# Generation-aware sizing.
# ----------------------------------------------------------------------------
_VMEM_CAP = None


def _tpu_vmem_capacity_bytes() -> int:
    global _VMEM_CAP
    if _VMEM_CAP is None:
        cap = None
        try:
            cap = int(pltpu.get_tpu_info().vmem_capacity_bytes)
        except Exception:
            cap = None
        if not cap:
            try:
                kind = jax.devices()[0].device_kind.lower()
            except Exception:
                kind = ""
            cap = (64 << 20) if "v7" in kind else (128 << 20)
        _VMEM_CAP = cap
    return _VMEM_CAP


def _gen_config():
    cap = _tpu_vmem_capacity_bytes()
    if cap <= (64 << 20):
        # v7x-class: 64 MiB physical VMEM, 2 TensorCores -> leave headroom for
        # Mosaic scratch/spills, small per-step budget, >= 6 grid steps.
        return dict(vmem_limit=max(cap - (16 << 20), 16 << 20),
                    step_budget=11 << 20, min_steps=6)
    # v5e / v6e: 128 MiB physical VMEM, 1 TensorCore -> bigger blocks / DMAs.
    return dict(vmem_limit=min(cap - (16 << 20), 112 << 20),
                step_budget=20 << 20, min_steps=3)


def _choose_nb(n, h, w, s, sp, in_bytes, cfg):
    """Images per grid step: fits the generation's VMEM step budget, divides n
    exactly (no remainder pad), keeps >= min_steps grid steps when n allows and
    prefers a sublane-aligned ((nb*h) % 8 == 0) input block."""
    out_bytes = in_bytes
    per_img = (h * w * (2 * in_bytes + 2)       # input block x2 (pipeline) + bf16 copy
               + h * sp * (4 + 2)               # stage-1 f32 acc + bf16 intermediate
               + s * sp * (2 * out_bytes + 4)   # output block x2 + stage-2 f32 acc
               + s * h * 2)                     # per-image batched-Wr row (bf16)
    nb_cap = max(1, min(n, cfg["step_budget"] // max(per_img, 1)))
    if n >= cfg["min_steps"]:
        nb_cap = max(1, min(nb_cap, n // cfg["min_steps"]))
    divisors = [d for d in range(1, nb_cap + 1) if n % d == 0]
    aligned = [d for d in divisors if (d * h) % 8 == 0]
    return max(aligned) if aligned else max(divisors)


# ----------------------------------------------------------------------------
# Pallas kernel: nb images per grid step, two MXU matmuls (bf16 in, f32 acc).
# ----------------------------------------------------------------------------
def _crop_resize_kernel(x_ref, wrb_ref, wc_ref, out_ref):
    nb, s, h = wrb_ref.shape
    sp = wc_ref.shape[1]
    # Cast per block: input stays in its native dtype in HBM (no wrapper pre-pass).
    x = x_ref[...].astype(jnp.bfloat16)                                   # (nb*H, W)
    # Stage 1: column crop+resize. One big lane-dense 2-D MXU matmul
    # (M = nb*H, N = Sp multiple of 128), f32 accumulation.
    t = jnp.dot(x, wc_ref[...], preferred_element_type=jnp.float32)      # (nb*H, Sp)
    t = t.astype(jnp.bfloat16).reshape(nb, h, sp)                        # view iff H % 8 == 0
    # Stage 2: row crop+resize. Batched matmul; Wr already carries the batch dim
    # (pre-broadcast host-side, DMA'd once) -> no broadcast_in_dim per grid step.
    out = jax.lax.dot_general(
        wrb_ref[...], t, (((2,), (1,)), ((0,), (0,))),
        preferred_element_type=jnp.float32)                               # (nb, S, Sp)
    out_ref[...] = out.astype(out_ref.dtype)


def _resident_spec(shape, single_buffer):
    idx = lambda i: (0,) * len(shape)
    if single_buffer:
        # Constant-index weight blocks: single buffer halves their VMEM.
        return pl.BlockSpec(shape, idx, pipeline_mode=pl.Buffered(1))
    return pl.BlockSpec(shape, idx)


@functools.partial(jax.jit, static_argnums=(3, 4))
def _crop_resize_call(x2, wr_b, wc, vmem_limit, single_buffer_weights):
    """x2: (N*H, W) native dtype; wr_b: (nb, S, H) bf16; wc: (W, Sp) bf16 with
    Sp % 128 == 0 and nb | N.  Returns (N, S, Sp) in x2.dtype."""
    nh, w = x2.shape
    nb, s, h = wr_b.shape
    sp = wc.shape[1]
    n = nh // h
    steps = n // nb
    in_b = x2.dtype.itemsize

    cost = pl.CostEstimate(
        flops=2 * n * h * w * sp + 2 * n * s * h * sp,
        transcendentals=0,
        bytes_accessed=nh * w * in_b + w * sp * 2 + nb * s * h * 2 + n * s * sp * in_b,
    )

    return pl.pallas_call(
        _crop_resize_kernel,
        out_shape=jax.ShapeDtypeStruct((n, s, sp), x2.dtype),
        grid=(steps,),
        in_specs=[
            pl.BlockSpec((nb * h, w), lambda i: (i, 0)),        # image chunk (native dtype)
            _resident_spec((nb, s, h), single_buffer_weights),  # batched row weights (bf16)
            _resident_spec((w, sp), single_buffer_weights),     # padded column weights (bf16)
        ],
        out_specs=pl.BlockSpec((nb, s, sp), lambda i: (i, 0, 0)),
        compiler_params=pltpu.CompilerParams(
            dimension_semantics=("parallel",),
            vmem_limit_bytes=vmem_limit),
        cost_estimate=cost,
    )(x2, wr_b, wc)


# ----------------------------------------------------------------------------
# Module equivalent.
# ----------------------------------------------------------------------------
class RandomResizedCrop:
    """Random square patch of side in [size, min(H, W)] (log-uniform scale),
    rescaled to (size, size) with antialiased bicubic interpolation. (..., H, W)."""

    def __init__(self, size: int, seed: int = 0):
        self.size = int(size)
        self._rng = np.random.RandomState(seed)   # host-side randomness, as in the torch module
        self.last_weights = None                  # (wr, wc) float32 of the most recent call
        self._single_buffer = None                # resolved on first call (pl.Buffered(1) support)

    def __call__(self, x: jax.Array) -> jax.Array:
        h, w = int(x.shape[-2]), int(x.shape[-1])
        s = self.size
        max_scale = max(min(h, w) / s, 1.0)          # clamp: never sample a reversed interval
        scale = rand_log_uniform(1.0, max_scale, self._rng)
        patch_size = int(round(s * scale))
        patch_size = max(1, min(patch_size, min(h, w)))          # clamp against FP drift
        top = int(self._rng.randint(0, h - patch_size + 1))
        left = int(self._rng.randint(0, w - patch_size + 1))

        # Fold crop + resize into static-shape linear maps -> no recompile per call.
        wr = crop_resize_weights(h, top, patch_size, s)          # (S, H)
        wc = crop_resize_weights(w, left, patch_size, s)         # (S, W)
        self.last_weights = (wr, wc)

        sp = ((max(s, 1) + 127) // 128) * 128                    # lane-dense output pad
        wc_pad = np.zeros((w, sp), dtype=np.float32)
        wc_pad[:, :s] = wc.T

        lead = x.shape[:-2]
        n = int(np.prod(lead)) if lead else 1
        x_flat = x.reshape((n * h, w))                           # metadata-only reshape
        if not jnp.issubdtype(x_flat.dtype, jnp.floating):
            x_flat = x_flat.astype(jnp.float32)

        cfg = _gen_config()
        nb = _choose_nb(n, h, w, s, sp, x_flat.dtype.itemsize, cfg)
        # Pre-batched row weights: tiny HBM array, removes the per-step broadcast.
        wr_b = np.ascontiguousarray(np.broadcast_to(wr[None], (nb, s, h)))

        wr_j = jnp.asarray(wr_b, dtype=jnp.bfloat16)
        wc_j = jnp.asarray(wc_pad, dtype=jnp.bfloat16)

        candidates = [True, False] if self._single_buffer is None else [self._single_buffer]
        out, last_err = None, None
        for sb in candidates:
            try:
                out = _crop_resize_call(x_flat, wr_j, wc_j, cfg["vmem_limit"], sb)
                self._single_buffer = sb
                break
            except Exception as e:   # pl.Buffered(1) unsupported -> default double-buffering
                last_err = e
        if out is None:
            raise last_err

        out = out[:, :, :s]                       # drop lane padding (fused with reshape below)
        return out.reshape(lead + (s, s))


if __name__ == "__main__":
    B, C, H, W = 2, 4, 16, 16
    size = 8

    key = jax.random.PRNGKey(0)
    x = jax.random.normal(key, (B, C, H, W), dtype=jnp.float32)

    crop = RandomResizedCrop(size=size, seed=0)
    y = jax.block_until_ready(crop(x))

    assert y.shape == (B, C, size, size), y.shape
    assert y.dtype == x.dtype
    assert bool(jnp.all(jnp.isfinite(y)))

    # Correctness vs an f32 einsum reference built from the same fold-in weights
    # (bf16 MXU operands give ~1e-2 absolute error on unit-scale inputs).
    wr, wc = crop.last_weights
    y_ref = jnp.einsum("sh,nhw,tw->nst", jnp.asarray(wr),
                       x.reshape(B * C, H, W), jnp.asarray(wc)).reshape(B, C, size, size)
    assert bool(jnp.allclose(y, y_ref, atol=7.5e-2, rtol=0.0)), \
        float(jnp.max(jnp.abs(y - y_ref)))

    # Second call with a new random crop: shapes unchanged -> jit/Mosaic cache hit.
    y2 = jax.block_until_ready(crop(x))
    assert y2.shape == (B, C, size, size)

    print("KERNEL_OK")
</pallas_src>

<mosaic_0001>
module attributes {stable_mosaic.version = 11 : i64} {
  func.func @_crop_resize_kernel(%arg0: i32, %arg1: memref<32x16xf32, #tpu.memory_space<vmem>>, %arg2: memref<2x8x16xbf16, #tpu.memory_space<vmem>>, %arg3: memref<16x128xbf16, #tpu.memory_space<vmem>>, %arg4: memref<2x8x128xf32, #tpu.memory_space<vmem>>) attributes {dimension_semantics = [#tpu.dimension_semantics<parallel>], iteration_bounds = array<i64: 4>, scalar_prefetch = 0 : i64, scratch_operands = 0 : i64, tpu.core_type = #tpu.core_type<tc>, window_params = [{transform_indices = @transform_0, window_bounds = array<i64: 32, 16>}, {pipeline_mode = #tpu.pipeline_mode<synchronous>, transform_indices = @transform_1, window_bounds = array<i64: 2, 8, 16>}, {pipeline_mode = #tpu.pipeline_mode<synchronous>, transform_indices = @transform_2, window_bounds = array<i64: 16, 128>}, {transform_indices = @transform_3, window_bounds = array<i64: 2, 8, 128>}]} {
    %c0 = arith.constant 0 : index
    %c0_0 = arith.constant 0 : index
    %0 = vector.load %arg1[%c0, %c0_0] : memref<32x16xf32, #tpu.memory_space<vmem>>, vector<32x16xf32>
    %1 = arith.truncf %0 : vector<32x16xf32> to vector<32x16xbf16>
    %c0_1 = arith.constant 0 : index
    %c0_2 = arith.constant 0 : index
    %2 = vector.load %arg3[%c0_1, %c0_2] : memref<16x128xbf16, #tpu.memory_space<vmem>>, vector<16x128xbf16>
    %cst = arith.constant dense<0.000000e+00> : vector<32x128xf32>
    %3 = tpu.matmul %1, %2, %cst {dimension_numbers = #tpu.dot_dimension_numbers<[1], [0], [0], [1], [0, 0, 1, 1], [], []>} : vector<32x16xbf16>, vector<16x128xbf16>, vector<32x128xf32> -> vector<32x128xf32>
    %4 = arith.truncf %3 : vector<32x128xf32> to vector<32x128xbf16>
    %5 = vector.shape_cast %4 : vector<32x128xbf16> to vector<2x16x128xbf16>
    %c0_3 = arith.constant 0 : index
    %c0_4 = arith.constant 0 : index
    %c0_5 = arith.constant 0 : index
    %6 = vector.load %arg2[%c0_3, %c0_4, %c0_5] : memref<2x8x16xbf16, #tpu.memory_space<vmem>>, vector<2x8x16xbf16>
    %cst_6 = arith.constant dense<0.000000e+00> : vector<2x8x128xf32>
    %7 = tpu.matmul %6, %5, %cst_6 {dimension_numbers = #tpu.dot_dimension_numbers<[2], [1], [1], [2], [0, 0, 0, 1, 1, 2], [0], [0]>} : vector<2x8x16xbf16>, vector<2x16x128xbf16>, vector<2x8x128xf32> -> vector<2x8x128xf32>
    %c0_7 = arith.constant 0 : index
    %c0_8 = arith.constant 0 : index
    %c0_9 = arith.constant 0 : index
    %8 = vector.load %arg4[%c0_7, %c0_8, %c0_9] : memref<2x8x128xf32, #tpu.memory_space<vmem>>, vector<2x8x128xf32>
    tpu.vector_store %arg4[%c0_7, %c0_8, %c0_9], %7 {strides = array<i32>} : memref<2x8x128xf32, #tpu.memory_space<vmem>>, vector<2x8x128xf32>,
    return
  }
  func.func @transform_0(%arg0: i32) -> (i32, i32) {
    %c0_i32 = arith.constant 0 : i32
    %c0_i32_0 = arith.constant 0 : i32
    return %arg0, %c0_i32 : i32, i32
  }
  func.func @transform_1(%arg0: i32) -> (i32, i32, i32) {
    %c0_i32 = arith.constant 0 : i32
    %c0_i32_0 = arith.constant 0 : i32
    %c0_i32_1 = arith.constant 0 : i32
    %c0_i32_2 = arith.constant 0 : i32
    return %c0_i32, %c0_i32_0, %c0_i32_1 : i32, i32, i32
  }
  func.func @transform_2(%arg0: i32) -> (i32, i32) {
    %c0_i32 = arith.constant 0 : i32
    %c0_i32_0 = arith.constant 0 : i32
    %c0_i32_1 = arith.constant 0 : i32
    return %c0_i32, %c0_i32_0 : i32, i32
  }
  func.func @transform_3(%arg0: i32) -> (i32, i32, i32) {
    %c0_i32 = arith.constant 0 : i32
    %c0_i32_0 = arith.constant 0 : i32
    %c0_i32_1 = arith.constant 0 : i32
    return %arg0, %c0_i32, %c0_i32_0 : i32, i32, i32
  }
}

module attributes {stable_mosaic.version = 11 : i64} {
  func.func @_crop_resize_kernel(%arg0: i32, %arg1: memref<32x16xf32, #tpu.memory_space<vmem>>, %arg2: memref<2x8x16xbf16, #tpu.memory_space<vmem>>, %arg3: memref<16x128xbf16, #tpu.memory_space<vmem>>, %arg4: memref<2x8x128xf32, #tpu.memory_space<vmem>>) attributes {dimension_semantics = [#tpu.dimension_semantics<parallel>], iteration_bounds = array<i64: 4>, scalar_prefetch = 0 : i64, scratch_operands = 0 : i64, tpu.core_type = #tpu.core_type<tc>, window_params = [{transform_indices = @transform_0, window_bounds = array<i64: 32, 16>}, {pipeline_mode = #tpu.pipeline_mode<synchronous>, transform_indices = @transform_1, window_bounds = array<i64: 2, 8, 16>}, {pipeline_mode = #tpu.pipeline_mode<synchronous>, transform_indices = @transform_2, window_bounds = array<i64: 16, 128>}, {transform_indices = @transform_3, window_bounds = array<i64: 2, 8, 128>}]} {
    %c0 = arith.constant 0 : index
    %c0_0 = arith.constant 0 : index
    %0 = vector.load %arg1[%c0, %c0_0] : memref<32x16xf32, #tpu.memory_space<vmem>>, vector<32x16xf32>
    %1 = arith.truncf %0 : vector<32x16xf32> to vector<32x16xbf16>
    %c0_1 = arith.constant 0 : index
    %c0_2 = arith.constant 0 : index
    %2 = vector.load %arg3[%c0_1, %c0_2] : memref<16x128xbf16, #tpu.memory_space<vmem>>, vector<16x128xbf16>
    %cst = arith.constant dense<0.000000e+00> : vector<32x128xf32>
    %3 = tpu.matmul %1, %2, %cst {dimension_numbers = #tpu.dot_dimension_numbers<[1], [0], [0], [1], [0, 0, 1, 1], [], []>} : vector<32x16xbf16>, vector<16x128xbf16>, vector<32x128xf32> -> vector<32x128xf32>
    %4 = arith.truncf %3 : vector<32x128xf32> to vector<32x128xbf16>
    %5 = vector.shape_cast %4 : vector<32x128xbf16> to vector<2x16x128xbf16>
    %c0_3 = arith.constant 0 : index
    %c0_4 = arith.constant 0 : index
    %c0_5 = arith.constant 0 : index
    %6 = vector.load %arg2[%c0_3, %c0_4, %c0_5] : memref<2x8x16xbf16, #tpu.memory_space<vmem>>, vector<2x8x16xbf16>
    %cst_6 = arith.constant dense<0.000000e+00> : vector<2x8x128xf32>
    %7 = tpu.matmul %6, %5, %cst_6 {dimension_numbers = #tpu.dot_dimension_numbers<[2], [1], [1], [2], [0, 0, 0, 1, 1, 2], [0], [0]>} : vector<2x8x16xbf16>, vector<2x16x128xbf16>, vector<2x8x128xf32> -> vector<2x8x128xf32>
    %c0_7 = arith.constant 0 : index
    %c0_8 = arith.constant 0 : index
    %c0_9 = arith.constant 0 : index
    %8 = vector.load %arg4[%c0_7, %c0_8, %c0_9] : memref<2x8x128xf32, #tpu.memory_space<vmem>>, vector<2x8x128xf32>
    tpu.vector_store %arg4[%c0_7, %c0_8, %c0_9], %7 {strides = array<i32>} : memref<2x8x128xf32, #tpu.memory_space<vmem>>, vector<2x8x128xf32>,
    return
  }
  func.func @transform_0(%arg0: i32) -> (i32, i32) {
    %c0_i32 = arith.constant 0 : i32
    %c0_i32_0 = arith.constant 0 : i32
    return %arg0, %c0_i32 : i32, i32
  }
  func.func @transform_1(%arg0: i32) -> (i32, i32, i32) {
    %c0_i32 = arith.constant 0 : i32
    %c0_i32_0 = arith.constant 0 : i32
    %c0_i32_1 = arith.constant 0 : i32
    %c0_i32_2 = arith.constant 0 : i32
    return %c0_i32, %c0_i32_0, %c0_i32_1 : i32, i32, i32
  }
  func.func @transform_2(%arg0: i32) -> (i32, i32) {
    %c0_i32 = arith.constant 0 : i32
    %c0_i32_0 = arith.constant 0 : i32
    %c0_i32_1 = arith.constant 0 : i32
    return %c0_i32, %c0_i32_0 : i32, i32
  }
  func.func @transform_3(%arg0: i32) -> (i32, i32, i32) {
    %c0_i32 = arith.constant 0 : i32
    %c0_i32_0 = arith.constant 0 : i32
    %c0_i32_1 = arith.constant 0 : i32
    return %arg0, %c0_i32, %c0_i32_0 : i32, i32, i32
  }
}

</mosaic_0001>

<llo_original>
// kernel: _crop_resize_call.1
$region0: #{_crop_resize_call.1}
  #allocation0 [shape = 'u32[]', space=smem, size = 0x4, offset = 0x4, fixed_abs, tag = 'smem constant byte address 0x4 - core index']
  #allocation1 [shape = 'u32[144,128]{1,0:T(1,128)}', space=vmem, size = 0x12000, scoped, tag = 'internal scratch']
  %s0 = inlined_call_operand.vmem [shape: f32[128,16], index: 0, kind: input, shape index: {}]
  %s1 = inlined_call_operand.vmem [shape: bf16[2,8,16], index: 1, kind: input, shape index: {}]
  %s2 = inlined_call_operand.vmem [shape: bf16[16,128], index: 2, kind: input, shape index: {}]
  %s3 = inlined_call_operand.hbm [shape: f32[8,8,128], index: 3, kind: output, shape index: {}]
  %s4 = sld [smem:[#allocation0]]
  $region45: #{_crop_resize_call.1} parent=0
    _
  %s6 = ssub.s32 1, %s4
  %s7 = scalar_select 0, %s6, %s4
  $region1: #{_crop_resize_call.1} parent=0
    #allocation2 [shape = 'u8[16384]{0}', space=vmem, size = 0x4000, scoped, tag = 'output window, operand 0']
    #allocation3 [shape = 's32[2]{0}', space=sflag, size = 0x8, scoped, tag = 'scoped memory for _crop_resize_call.1']
    %8 = vsyncpa [#allocation3], 0
    %s9 = scalar_lea.sflag [#allocation3], 1
    %10 = vsyncpa %s9, 0
    loop: start=0, step=1, limit=6
    $region2: #{_crop_resize_call.1} parent=1 // loop_pre_header
      _
    $region3: #{_crop_resize_call.1} parent=1 // loop_header
      %s12 = sphi 0, %s16
      %p13 = scmp.ge.s32.totalorder %s12, 6
      %s22 = sphi 0, %s24
      %s25 = sphi 0, %s22
      %s26 = sphi 0, %s25
      %s42 = sphi 0, %s26
      %s46 = sphi 0, %s46
      %s48 = sphi 0, %s46
      %s49 = sphi 0, %s48
      %s63 = sphi 0, %s49
      %s67 = sphi 0, %s67
      %s69 = sphi 0, %s67
      %s70 = sphi 0, %s69
      %s84 = sphi 0, %s70
      %s90 = sphi 0, %s92
      %s93 = sphi 0, %s90
      %s94 = sphi 0, %s93
      %s110 = sphi 0, %s94
    $region4: #{_crop_resize_call.1} parent=1 // loop_header_branch
      %15 = sbr.rel (%p13) target = $region8
    $region5: #{_crop_resize_call.1} parent=1 // loop_body
      %s17 = ssub.s32 %s12, 1
      %s18 = ssub.s32 %s12, 2
      %s19 = sadd.s32 %s12, 1
      %s20 = ssub.s32 %s12, %s19
      %p21 = scmp.eq.s32.totalorder %s20, 0
      %s23 = sadd.s32 %s22, 1
      %s24 = scalar_select %p21, %s22, %s23
      %p27 = pneg %p21
      %p28 = scmp.eq.s32.totalorder %s12, 3
      %p29 = por %p27, %p28
      %p30 = scmp.ne.s32.totalorder %s22, %s25
      %p31 = scmp.eq.s32.totalorder %s12, 0
      %p32 = por %p30, %p31
      %p33 = scmp.ne.s32.totalorder %s22, %s25
      %p34 = scmp.eq.s32.totalorder %s17, 3
      %p35 = por %p33, %p34
      %p36 = scmp.ne.s32.totalorder %s25, %s26
      %p37 = scmp.eq.s32.totalorder %s17, 0
      %p38 = por %p36, %p37
      %p39 = scmp.ne.s32.totalorder %s25, %s26
      %p40 = scmp.eq.s32.totalorder %s18, 3
      %p41 = por %p39, %p40
      %p43 = scmp.ne.s32.totalorder %s26, %s42
      %p44 = scmp.eq.s32.totalorder %s18, 0
      %p45 = por %p43, %p44
      %s47 = sadd.s32 %s46, 1
      %p50 = scmp.eq.s32.totalorder %s12, 3
      %p51 = scmp.ne.s32.totalorder %s46, %s48
      %p52 = scmp.eq.s32.totalorder %s12, 0
      %p53 = por %p51, %p52
      %p54 = scmp.ne.s32.totalorder %s46, %s48
      %p55 = scmp.eq.s32.totalorder %s17, 3
      %p56 = por %p54, %p55
      %p57 = scmp.ne.s32.totalorder %s48, %s49
      %p58 = scmp.eq.s32.totalorder %s17, 0
      %p59 = por %p57, %p58
      %p60 = scmp.ne.s32.totalorder %s48, %s49
      %p61 = scmp.eq.s32.totalorder %s18, 3
      %p62 = por %p60, %p61
      %p64 = scmp.ne.s32.totalorder %s49, %s63
      %p65 = scmp.eq.s32.totalorder %s18, 0
      %p66 = por %p64, %p65
      %s68 = sadd.s32 %s67, 1
      %p71 = scmp.eq.s32.totalorder %s12, 3
      %p72 = scmp.ne.s32.totalorder %s67, %s69
      %p73 = scmp.eq.s32.totalorder %s12, 0
      %p74 = por %p72, %p73
      %p75 = scmp.ne.s32.totalorder %s67, %s69
      %p76 = scmp.eq.s32.totalorder %s17, 3
      %p77 = por %p75, %p76
      %p78 = scmp.ne.s32.totalorder %s69, %s70
      %p79 = scmp.eq.s32.totalorder %s17, 0
      %p80 = por %p78, %p79
      %p81 = scmp.ne.s32.totalorder %s69, %s70
      %p82 = scmp.eq.s32.totalorder %s18, 3
      %p83 = por %p81, %p82
      %p85 = scmp.ne.s32.totalorder %s70, %s84
      %p86 = scmp.eq.s32.totalorder %s18, 0
      %p87 = por %p85, %p86
      %s88 = ssub.s32 %s12, %s19
      %p89 = scmp.eq.s32.totalorder %s88, 0
      %s91 = sadd.s32 %s90, 1
      %s92 = scalar_select %p89, %s90, %s91
      %p95 = pneg %p89
      %p96 = scmp.eq.s32.totalorder %s12, 3
      %p97 = por %p95, %p96
      %p98 = scmp.ne.s32.totalorder %s90, %s93
      %p99 = scmp.eq.s32.totalorder %s12, 0
      %p100 = por %p98, %p99
      %p101 = scmp.ne.s32.totalorder %s90, %s93
      %p102 = scmp.eq.s32.totalorder %s17, 3
      %p103 = por %p101, %p102
      %p104 = scmp.ne.s32.totalorder %s93, %s94
      %p105 = scmp.eq.s32.totalorder %s17, 0
      %p106 = por %p104, %p105
      %p107 = scmp.ne.s32.totalorder %s93, %s94
      %p108 = scmp.eq.s32.totalorder %s18, 3
      %p109 = por %p107, %p108
      %p111 = scmp.ne.s32.totalorder %s94, %s110
      %p112 = scmp.eq.s32.totalorder %s18, 0
      %p113 = por %p111, %p112
      %p114 = scmp.le.s32.totalorder 1, %s12
      %p115 = scmp.lt.s32.totalorder %s12, 5
      %p116 = pnand %p114, %p115
      %p117 = pneg %p116
      // Predicated region
      $region9: #{_crop_resize_call.1} parent=5 // pred_check
        _
      $region10: #{_crop_resize_call.1} parent=5 // pred_check_branch
        %119 = sbr.rel (%p116) target = $region12
      $region11: #{_crop_resize_call.1} parent=5 // pred_region
        %s120 = ssub.s32 %s12, 1
        // Predicated region
        $region13: #{_crop_resize_call.1} parent=11 // pred_check
          %p121 = pneg %p59
        $region14: #{_crop_resize_call.1} parent=11 // pred_check_branch
          %123 = sbr.rel (%p121) target = $region16
        $region15: #{_crop_resize_call.1} parent=11 // pred_region
          _
        $region16: #{_crop_resize_call.1} parent=11 // pred_fallthru
          _
        // Predicated region
        $region17: #{_crop_resize_call.1} parent=11 // pred_check
          %p124 = pneg %p80
        $region18: #{_crop_resize_call.1} parent=11 // pred_check_branch
          %126 = sbr.rel (%p124) target = $region20
        $region19: #{_crop_resize_call.1} parent=11 // pred_region
          _
        $region20: #{_crop_resize_call.1} parent=11 // pred_fallthru
          _
      $region12: #{_crop_resize_call.1} parent=5 // pred_fallthru
        _
      %p127 = scmp.lt.s32.totalorder %s12, 4
      // Predicated region
      $region21: #{_crop_resize_call.1} parent=5 // pred_check
        %p128 = pneg %p127
      $region22: #{_crop_resize_call.1} parent=5 // pred_check_branch
        %130 = sbr.rel (%p128) target = $region24
      $region23: #{_crop_resize_call.1} parent=5 // pred_region
        // Predicated region
        $region25: #{_crop_resize_call.1} parent=23 // pred_check
          %p131 = pneg %p32
        $region26: #{_crop_resize_call.1} parent=23 // pred_check_branch
          %133 = sbr.rel (%p131) target = $region28
        $region27: #{_crop_resize_call.1} parent=23 // pred_region
          %s134 = smul.u32 4, %s12
          %p135 = scmp.lt.s32.totalorder %s134, 15
          %s136 = scalar_select %p135, %s134, 15
          %s137 = smul.addr %s136, 8
          %s138 = scalar_lea.vmem %s0, %s137
          %s139 = smul.u32 4, %s12
        $region28: #{_crop_resize_call.1} parent=23 // pred_fallthru
          _
      $region24: #{_crop_resize_call.1} parent=5 // pred_fallthru
        _
      %p140 = scmp.le.s32.totalorder 1, %s12
      %p141 = scmp.lt.s32.totalorder %s12, 5
      %p142 = pnand %p140, %p141
      %p143 = pneg %p142
      // Predicated region
      $region29: #{_crop_resize_call.1} parent=5 // pred_check
        _
      $region30: #{_crop_resize_call.1} parent=5 // pred_check_branch
        %145 = sbr.rel (%p142) target = $region32
      $region31: #{_crop_resize_call.1} parent=5 // pred_region
        %s146 = ssub.s32 %s12, 1
        %s147 = smul.u32 4, %s17
        %p148 = scmp.lt.s32.totalorder %s147, 15
        %s149 = scalar_select %p148, %s147, 15
        %s150 = smul.addr %s149, 8
        %s151 = scalar_lea.vmem %s0, %s150
        %p152 = pneg %p38
        %p153 = pneg %p35
        %p154 = pneg %p59
        %p155 = pneg %p56
        %p156 = pneg %p80
        %p157 = pneg %p77
        %p158 = pneg %p106
        %p159 = pneg %p103
        %s160 = sand.u32 %s93, 1
        %s161 = scalar_lea.sflag [#allocation3], %s160
        %s162 = sand.u32 %s93, 1
        %s163 = smul.addr %s162, 16
        %s164 = scalar_lea.vmem [#allocation2], %s163
        %s165 = smul.u32 4, %s17
        %p166 = scmp.lt.s32.totalorder %s165, 15
        %s167 = scalar_select %p166, %s165, 15
        %s168 = smul.addr %s167, 8
        %s169 = scalar_lea.vmem %s0, %s168
        %s170 = smul.u32 4, %s17
        %s171 = smul.u32 2, %s17
        %v173 = vld [vmem:[%s169] sm:$0xff]
        %v174 = vld [vmem:[%s169 + $0x8] sm:$0xff]
        %v175 = vld [vmem:[%s169 + $0x10] sm:$0xff]
        %v176 = vld [vmem:[%s169 + $0x18] sm:$0xff]
        %v177 = vpack.c.bf16 %v174, %v173
        %v178 = vpack.c.bf16 %v176, %v175
        %v179 = vld [vmem:[%s2] sm:$0xf]
        %v180 = vld [vmem:[%s2 + $0x4] sm:$0xf]
        %v183 = vunpack.c.l.b16 %v179
        %v184 = vunpack.c.l.b16 %v180
        %v185 = vpack.c.b16 %v184, %v183
        %vm187 = vcmask 130048
        %v189 = vsel %vm187, %v177, 0
        %v192 = vsel %vm187, %v178, 0
        %194 = vmatprep.subr.bf16.mxu0 0
        %195 = vmatpush1.bf16.msra.mxu0 0
        %196 = vmatprep.subr.bf16.mxu0 0
        %197 = vmatpush1.bf16.msra.mxu0 0
        %198 = vmatprep.subr.bf16.mxu0 0
        %199 = vmatpush1.bf16.msra.mxu0 0
        %200 = vmatprep.subr.bf16.mxu0 0
        %201 = vmatpush1.bf16.msra.mxu0 0
        %202 = vmatprep.subr.bf16.mxu0 0
        %203 = vmatpush1.bf16.msra.mxu0 0
        %204 = vmatprep.subr.bf16.mxu0 0
        %205 = vmatpush1.bf16.msra.mxu0 0
        %206 = vmatprep.subr.bf16.mxu0 0
        %207 = vmatpush1.bf16.msra.mxu0 0
        %208 = vmatprep.subr.bf16.mxu0 0
        %209 = vmatpush1.bf16.msra.mxu0 %v185
        %210 = vmatprep.subr.bf16.mxu0 0
        %211 = vmatpush2.bf16.msra.mxu0 0
        %212 = vmatprep.subr.bf16.mxu0 0
        %213 = vmatpush2.bf16.msra.mxu0 0
        %214 = vmatprep.subr.bf16.mxu0 0
        %215 = vmatpush2.bf16.msra.mxu0 0
        %216 = vmatprep.subr.bf16.mxu0 0
        %217 = vmatpush2.bf16.msra.mxu0 0
        %218 = vmatprep.subr.bf16.mxu0 0
        %219 = vmatpush2.bf16.msra.mxu0 0
        %220 = vmatprep.subr.bf16.mxu0 0
        %221 = vmatpush2.bf16.msra.mxu0 0
        %222 = vmatprep.subr.bf16.mxu0 0
        %223 = vmatpush2.bf16.msra.mxu0 0
        %224 = vmatprep.subr.bf16.mxu0 0
        %225 = vmatpush2.bf16.msra.mxu0 0
        %226 = vmatprep.mubr.bf16.mxu0 0
        %227 = vmatmul.mubr.bf16.gmra.mxu0 %v189
        %v228 = vpop.f32.mrf.mxu0
        %v229 = vadd.f32 0.0, %v228
        %v230 = vpop.f32.mrf.mxu0
        %v231 = vpop.f32.mrf.mxu0
        %v232 = vadd.f32 0.0, %v231
        %v233 = vpop.f32.mrf.mxu0
        %234 = vmatprep.mubr.bf16.mxu0 0
        %235 = vmatmul.mubr.bf16.gmra.mxu0 %v192
        %v236 = vpop.f32.mrf.mxu0
        %v237 = vadd.f32 0.0, %v236
        %v238 = vpop.f32.mrf.mxu0
        %v239 = vpop.f32.mrf.mxu0
        %v240 = vadd.f32 0.0, %v239
        %v241 = vpop.f32.mrf.mxu0
        %242 = vdwg.mxu0
        %v243 = vpack.c.bf16 %v232, %v229
        %v244 = vpack.c.bf16 %v240, %v237
        %v245 = vld [vmem:[%s1] sm:$0xf]
        %v246 = vld [vmem:[%s1 + $0x4] sm:$0xf]
        %v248 = vsel %vm187, %v245, 0
        %250 = vmatprep.subr.bf16.mxu0 0
        %251 = vmatpush1.bf16.msra.mxu0 0
        %252 = vmatprep.subr.bf16.mxu0 0
        %253 = vmatpush1.bf16.msra.mxu0 0
        %254 = vmatprep.subr.bf16.mxu0 0
        %255 = vmatpush1.bf16.msra.mxu0 0
        %256 = vmatprep.subr.bf16.mxu0 0
        %257 = vmatpush1.bf16.msra.mxu0 0
        %258 = vmatprep.subr.bf16.mxu0 0
        %259 = vmatpush1.bf16.msra.mxu0 0
        %260 = vmatprep.subr.bf16.mxu0 0
        %261 = vmatpush1.bf16.msra.mxu0 0
        %262 = vmatprep.subr.bf16.mxu0 0
        %263 = vmatpush1.bf16.msra.mxu0 0
        %264 = vmatprep.subr.bf16.mxu0 0
        %265 = vmatpush1.bf16.msra.mxu0 %v243
        %266 = vmatprep.subr.bf16.mxu0 0
        %267 = vmatpush2.bf16.msra.mxu0 0
        %268 = vmatprep.subr.bf16.mxu0 0
        %269 = vmatpush2.bf16.msra.mxu0 0
        %270 = vmatprep.subr.bf16.mxu0 0
        %271 = vmatpush2.bf16.msra.mxu0 0
        %272 = vmatprep.subr.bf16.mxu0 0
        %273 = vmatpush2.bf16.msra.mxu0 0
        %274 = vmatprep.subr.bf16.mxu0 0
        %275 = vmatpush2.bf16.msra.mxu0 0
        %276 = vmatprep.subr.bf16.mxu0 0
        %277 = vmatpush2.bf16.msra.mxu0 0
        %278 = vmatprep.subr.bf16.mxu0 0
        %279 = vmatpush2.bf16.msra.mxu0 0
        %280 = vmatprep.subr.bf16.mxu0 0
        %281 = vmatpush2.bf16.msra.mxu0 0
        %282 = vmatprep.mubr.bf16.mxu0 0
        %283 = vmatmul.mubr.bf16.gmra.mxu0 %v248
        %v284 = vpop.f32.mrf.mxu0
        %v285 = vadd.f32 0.0, %v284
        %v286 = vpop.f32.mrf.mxu0
        %v287 = vpop.f32.mrf.mxu0
        %v288 = vpop.f32.mrf.mxu0
        %289 = vdwg.mxu0
        %v291 = vsel %vm187, %v246, 0
        %293 = vmatprep.subr.bf16.mxu0 0
        %294 = vmatpush1.bf16.msra.mxu0 0
        %295 = vmatprep.subr.bf16.mxu0 0
        %296 = vmatpush1.bf16.msra.mxu0 0
        %297 = vmatprep.subr.bf16.mxu0 0
        %298 = vmatpush1.bf16.msra.mxu0 0
        %299 = vmatprep.subr.bf16.mxu0 0
        %300 = vmatpush1.bf16.msra.mxu0 0
        %301 = vmatprep.subr.bf16.mxu0 0
        %302 = vmatpush1.bf16.msra.mxu0 0
        %303 = vmatprep.subr.bf16.mxu0 0
        %304 = vmatpush1.bf16.msra.mxu0 0
        %305 = vmatprep.subr.bf16.mxu0 0
        %306 = vmatpush1.bf16.msra.mxu0 0
        %307 = vmatprep.subr.bf16.mxu0 0
        %308 = vmatpush1.bf16.msra.mxu0 %v244
        %309 = vmatprep.subr.bf16.mxu0 0
        %310 = vmatpush2.bf16.msra.mxu0 0
        %311 = vmatprep.subr.bf16.mxu0 0
        %312 = vmatpush2.bf16.msra.mxu0 0
        %313 = vmatprep.subr.bf16.mxu0 0
        %314 = vmatpush2.bf16.msra.mxu0 0
        %315 = vmatprep.subr.bf16.mxu0 0
        %316 = vmatpush2.bf16.msra.mxu0 0
        %317 = vmatprep.subr.bf16.mxu0 0
        %318 = vmatpush2.bf16.msra.mxu0 0
        %319 = vmatprep.subr.bf16.mxu0 0
        %320 = vmatpush2.bf16.msra.mxu0 0
        %321 = vmatprep.subr.bf16.mxu0 0
        %322 = vmatpush2.bf16.msra.mxu0 0
        %323 = vmatprep.subr.bf16.mxu0 0
        %324 = vmatpush2.bf16.msra.mxu0 0
        %325 = vmatprep.mubr.bf16.mxu0 0
        %326 = vmatmul.mubr.bf16.gmra.mxu0 %v291
        %v327 = vpop.f32.mrf.mxu0
        %v328 = vadd.f32 0.0, %v327
        %v329 = vpop.f32.mrf.mxu0
        %v330 = vpop.f32.mrf.mxu0
        %v331 = vpop.f32.mrf.mxu0
        %332 = vdwg.mxu0
        %333 = vst [vmem:[%s164] sm:$0xff] %v285
        %334 = vst [vmem:[%s164 + $0x8] sm:$0xff] %v328
        %s335 = sand.u32 %s93, 1
        %s336 = scalar_lea.sflag [#allocation3], %s335
        %s337 = sand.u32 %s93, 1
        %s338 = smul.addr %s337, 16
        %s339 = scalar_lea.vmem [#allocation2], %s338
        // Predicated region
        $region33: #{_crop_resize_call.1} parent=31 // pred_check
          %p340 = pneg %p103
        $region34: #{_crop_resize_call.1} parent=31 // pred_check_branch
          %342 = sbr.rel (%p340) target = $region36
        $region35: #{_crop_resize_call.1} parent=31 // pred_region
          %s343 = smul.u32 2, %s17
          %s345 = ssub.s32 256, 256
          %346 = vsyncadd %s336, %s345
          %s347 = smul.addr %s343, 128
          %s348 = scalar_lea.hbm %s3, %s347
          %s349 = sshll.u32 %s339, 4
          %s350 = int_to_ptr.vmem [resolvable:$true] %s349
          %355 = dma.vmem_to_hbm [thread:$0]  %s350, 256, %s348, %s336, 128, 128, 8
        $region36: #{_crop_resize_call.1} parent=31 // pred_fallthru
          _
      $region32: #{_crop_resize_call.1} parent=5 // pred_fallthru
        _
      %p356 = scmp.le.s32.totalorder 2, %s12
      // Predicated region
      $region37: #{_crop_resize_call.1} parent=5 // pred_check
        %p357 = pneg %p356
      $region38: #{_crop_resize_call.1} parent=5 // pred_check_branch
        %359 = sbr.rel (%p357) target = $region40
      $region39: #{_crop_resize_call.1} parent=5 // pred_region
        %s360 = ssub.s32 %s12, 2
        // Predicated region
        $region41: #{_crop_resize_call.1} parent=39 // pred_check
          %p361 = pneg %p109
        $region42: #{_crop_resize_call.1} parent=39 // pred_check_branch
          %363 = sbr.rel (%p361) target = $region44
        $region43: #{_crop_resize_call.1} parent=39 // pred_region
          %s364 = sand.u32 %s94, 1
          %s365 = scalar_lea.sflag [#allocation3], %s364
          %s366 = sand.u32 %s94, 1
          %s367 = smul.addr %s366, 16
          %s368 = scalar_lea.vmem [#allocation2], %s367
          %369 = dma.done %s365, 256
        $region44: #{_crop_resize_call.1} parent=39 // pred_fallthru
          _
      $region40: #{_crop_resize_call.1} parent=5 // pred_fallthru
        _
    $region6: #{_crop_resize_call.1} parent=1 // loop_footer
      %s16 = sadd.s32 1, %s12
    $region7: #{_crop_resize_call.1} parent=1 // loop_footer_branch
      %11 = sbr.rel target = $region3
    $region8: #{_crop_resize_call.1} parent=1 // loop_exit
      _
    %370 = vsyncpa [#allocation3], 1
    %s371 = scalar_lea.sflag [#allocation3], 1
    %372 = vsyncpa %s371, 1

// kernel: _crop_resize_call.1
$region0: #{_crop_resize_call.1}
  #allocation0 [shape = 'u32[]', space=smem, size = 0x4, offset = 0x4, fixed_abs, tag = 'smem constant byte address 0x4 - core index']
  #allocation1 [shape = 'u32[144,128]{1,0:T(1,128)}', space=vmem, size = 0x12000, scoped, tag = 'internal scratch']
  %s0 = inlined_call_operand.vmem [shape: f32[128,16], index: 0, kind: input, shape index: {}]
  %s1 = inlined_call_operand.vmem [shape: bf16[2,8,16], index: 1, kind: input, shape index: {}]
  %s2 = inlined_call_operand.vmem [shape: bf16[16,128], index: 2, kind: input, shape index: {}]
  %s3 = inlined_call_operand.hbm [shape: f32[8,8,128], index: 3, kind: output, shape index: {}]
  %s4 = sld [smem:[#allocation0]]
  $region45: #{_crop_resize_call.1} parent=0
    _
  %s6 = ssub.s32 1, %s4
  %s7 = scalar_select 0, %s6, %s4
  $region1: #{_crop_resize_call.1} parent=0
    #allocation2 [shape = 'u8[16384]{0}', space=vmem, size = 0x4000, scoped, tag = 'output window, operand 0']
    #allocation3 [shape = 's32[2]{0}', space=sflag, size = 0x8, scoped, tag = 'scoped memory for _crop_resize_call.1']
    %8 = vsyncpa [#allocation3], 0
    %s9 = scalar_lea.sflag [#allocation3], 1
    %10 = vsyncpa %s9, 0
    loop: start=0, step=1, limit=6
    $region2: #{_crop_resize_call.1} parent=1 // loop_pre_header
      _
    $region3: #{_crop_resize_call.1} parent=1 // loop_header
      %s12 = sphi 0, %s16
      %p13 = scmp.ge.s32.totalorder %s12, 6
      %s22 = sphi 0, %s24
      %s25 = sphi 0, %s22
      %s26 = sphi 0, %s25
      %s42 = sphi 0, %s26
      %s46 = sphi 0, %s46
      %s48 = sphi 0, %s46
      %s49 = sphi 0, %s48
      %s63 = sphi 0, %s49
      %s67 = sphi 0, %s67
      %s69 = sphi 0, %s67
      %s70 = sphi 0, %s69
      %s84 = sphi 0, %s70
      %s90 = sphi 0, %s92
      %s93 = sphi 0, %s90
      %s94 = sphi 0, %s93
      %s110 = sphi 0, %s94
    $region4: #{_crop_resize_call.1} parent=1 // loop_header_branch
      %15 = sbr.rel (%p13) target = $region8
    $region5: #{_crop_resize_call.1} parent=1 // loop_body
      %s17 = ssub.s32 %s12, 1
      %s18 = ssub.s32 %s12, 2
      %s19 = sadd.s32 %s12, 1
      %s20 = ssub.s32 %s12, %s19
      %p21 = scmp.eq.s32.totalorder %s20, 0
      %s23 = sadd.s32 %s22, 1
      %s24 = scalar_select %p21, %s22, %s23
      %p27 = pneg %p21
      %p28 = scmp.eq.s32.totalorder %s12, 3
      %p29 = por %p27, %p28
      %p30 = scmp.ne.s32.totalorder %s22, %s25
      %p31 = scmp.eq.s32.totalorder %s12, 0
      %p32 = por %p30, %p31
      %p33 = scmp.ne.s32.totalorder %s22, %s25
      %p34 = scmp.eq.s32.totalorder %s17, 3
      %p35 = por %p33, %p34
      %p36 = scmp.ne.s32.totalorder %s25, %s26
      %p37 = scmp.eq.s32.totalorder %s17, 0
      %p38 = por %p36, %p37
      %p39 = scmp.ne.s32.totalorder %s25, %s26
      %p40 = scmp.eq.s32.totalorder %s18, 3
      %p41 = por %p39, %p40
      %p43 = scmp.ne.s32.totalorder %s26, %s42
      %p44 = scmp.eq.s32.totalorder %s18, 0
      %p45 = por %p43, %p44
      %s47 = sadd.s32 %s46, 1
      %p50 = scmp.eq.s32.totalorder %s12, 3
      %p51 = scmp.ne.s32.totalorder %s46, %s48
      %p52 = scmp.eq.s32.totalorder %s12, 0
      %p53 = por %p51, %p52
      %p54 = scmp.ne.s32.totalorder %s46, %s48
      %p55 = scmp.eq.s32.totalorder %s17, 3
      %p56 = por %p54, %p55
      %p57 = scmp.ne.s32.totalorder %s48, %s49
      %p58 = scmp.eq.s32.totalorder %s17, 0
      %p59 = por %p57, %p58
      %p60 = scmp.ne.s32.totalorder %s48, %s49
      %p61 = scmp.eq.s32.totalorder %s18, 3
      %p62 = por %p60, %p61
      %p64 = scmp.ne.s32.totalorder %s49, %s63
      %p65 = scmp.eq.s32.totalorder %s18, 0
      %p66 = por %p64, %p65
      %s68 = sadd.s32 %s67, 1
      %p71 = scmp.eq.s32.totalorder %s12, 3
      %p72 = scmp.ne.s32.totalorder %s67, %s69
      %p73 = scmp.eq.s32.totalorder %s12, 0
      %p74 = por %p72, %p73
      %p75 = scmp.ne.s32.totalorder %s67, %s69
      %p76 = scmp.eq.s32.totalorder %s17, 3
      %p77 = por %p75, %p76
      %p78 = scmp.ne.s32.totalorder %s69, %s70
      %p79 = scmp.eq.s32.totalorder %s17, 0
      %p80 = por %p78, %p79
      %p81 = scmp.ne.s32.totalorder %s69, %s70
      %p82 = scmp.eq.s32.totalorder %s18, 3
      %p83 = por %p81, %p82
      %p85 = scmp.ne.s32.totalorder %s70, %s84
      %p86 = scmp.eq.s32.totalorder %s18, 0
      %p87 = por %p85, %p86
      %s88 = ssub.s32 %s12, %s19
      %p89 = scmp.eq.s32.totalorder %s88, 0
      %s91 = sadd.s32 %s90, 1
      %s92 = scalar_select %p89, %s90, %s91
      %p95 = pneg %p89
      %p96 = scmp.eq.s32.totalorder %s12, 3
      %p97 = por %p95, %p96
      %p98 = scmp.ne.s32.totalorder %s90, %s93
      %p99 = scmp.eq.s32.totalorder %s12, 0
      %p100 = por %p98, %p99
      %p101 = scmp.ne.s32.totalorder %s90, %s93
      %p102 = scmp.eq.s32.totalorder %s17, 3
      %p103 = por %p101, %p102
      %p104 = scmp.ne.s32.totalorder %s93, %s94
      %p105 = scmp.eq.s32.totalorder %s17, 0
      %p106 = por %p104, %p105
      %p107 = scmp.ne.s32.totalorder %s93, %s94
      %p108 = scmp.eq.s32.totalorder %s18, 3
      %p109 = por %p107, %p108
      %p111 = scmp.ne.s32.totalorder %s94, %s110
      %p112 = scmp.eq.s32.totalorder %s18, 0
      %p113 = por %p111, %p112
      %p114 = scmp.le.s32.totalorder 1, %s12
      %p115 = scmp.lt.s32.totalorder %s12, 5
      %p116 = pnand %p114, %p115
      %p117 = pneg %p116
      // Predicated region
      $region9: #{_crop_resize_call.1} parent=5 // pred_check
        _
      $region10: #{_crop_resize_call.1} parent=5 // pred_check_branch
        %119 = sbr.rel (%p116) target = $region12
      $region11: #{_crop_resize_call.1} parent=5 // pred_region
        %s120 = ssub.s32 %s12, 1
        // Predicated region
        $region13: #{_crop_resize_call.1} parent=11 // pred_check
          %p121 = pneg %p59
        $region14: #{_crop_resize_call.1} parent=11 // pred_check_branch
          %123 = sbr.rel (%p121) target = $region16
        $region15: #{_crop_resize_call.1} parent=11 // pred_region
          _
        $region16: #{_crop_resize_call.1} parent=11 // pred_fallthru
          _
        // Predicated region
        $region17: #{_crop_resize_call.1} parent=11 // pred_check
          %p124 = pneg %p80
        $region18: #{_crop_resize_call.1} parent=11 // pred_check_branch
          %126 = sbr.rel (%p124) target = $region20
        $region19: #{_crop_resize_call.1} parent=11 // pred_region
          _
        $region20: #{_crop_resize_call.1} parent=11 // pred_fallthru
          _
      $region12: #{_crop_resize_call.1} parent=5 // pred_fallthru
        _
      %p127 = scmp.lt.s32.totalorder %s12, 4
      // Predicated region
      $region21: #{_crop_resize_call.1} parent=5 // pred_check
        %p128 = pneg %p127
      $region22: #{_crop_resize_call.1} parent=5 // pred_check_branch
        %130 = sbr.rel (%p128) target = $region24
      $region23: #{_crop_resize_call.1} parent=5 // pred_region
        // Predicated region
        $region25: #{_crop_resize_call.1} parent=23 // pred_check
          %p131 = pneg %p32
        $region26: #{_crop_resize_call.1} parent=23 // pred_check_branch
          %133 = sbr.rel (%p131) target = $region28
        $region27: #{_crop_resize_call.1} parent=23 // pred_region
          %s134 = smul.u32 4, %s12
          %p135 = scmp.lt.s32.totalorder %s134, 15
          %s136 = scalar_select %p135, %s134, 15
          %s137 = smul.addr %s136, 8
          %s138 = scalar_lea.vmem %s0, %s137
          %s139 = smul.u32 4, %s12
        $region28: #{_crop_resize_call.1} parent=23 // pred_fallthru
          _
      $region24: #{_crop_resize_call.1} parent=5 // pred_fallthru
        _
      %p140 = scmp.le.s32.totalorder 1, %s12
      %p141 = scmp.lt.s32.totalorder %s12, 5
      %p142 = pnand %p140, %p141
      %p143 = pneg %p142
      // Predicated region
      $region29: #{_crop_resize_call.1} parent=5 // pred_check
        _
      $region30: #{_crop_resize_call.1} parent=5 // pred_check_branch
        %145 = sbr.rel (%p142) target = $region32
      $region31: #{_crop_resize_call.1} parent=5 // pred_region
        %s146 = ssub.s32 %s12, 1
        %s147 = smul.u32 4, %s17
        %p148 = scmp.lt.s32.totalorder %s147, 15
        %s149 = scalar_select %p148, %s147, 15
        %s150 = smul.addr %s149, 8
        %s151 = scalar_lea.vmem %s0, %s150
        %p152 = pneg %p38
        %p153 = pneg %p35
        %p154 = pneg %p59
        %p155 = pneg %p56
        %p156 = pneg %p80
        %p157 = pneg %p77
        %p158 = pneg %p106
        %p159 = pneg %p103
        %s160 = sand.u32 %s93, 1
        %s161 = scalar_lea.sflag [#allocation3], %s160
        %s162 = sand.u32 %s93, 1
        %s163 = smul.addr %s162, 16
        %s164 = scalar_lea.vmem [#allocation2], %s163
        %s165 = smul.u32 4, %s17
        %p166 = scmp.lt.s32.totalorder %s165, 15
        %s167 = scalar_select %p166, %s165, 15
        %s168 = smul.addr %s167, 8
        %s169 = scalar_lea.vmem %s0, %s168
        %s170 = smul.u32 4, %s17
        %s171 = smul.u32 2, %s17
        %v173 = vld [vmem:[%s169] sm:$0xff]
        %v174 = vld [vmem:[%s169 + $0x8] sm:$0xff]
        %v175 = vld [vmem:[%s169 + $0x10] sm:$0xff]
        %v176 = vld [vmem:[%s169 + $0x18] sm:$0xff]
        %v177 = vpack.c.bf16 %v174, %v173
        %v178 = vpack.c.bf16 %v176, %v175
        %v179 = vld [vmem:[%s2] sm:$0xf]
        %v180 = vld [vmem:[%s2 + $0x4] sm:$0xf]
        %v183 = vunpack.c.l.b16 %v179
        %v184 = vunpack.c.l.b16 %v180
        %v185 = vpack.c.b16 %v184, %v183
        %vm187 = vcmask 130048
        %v189 = vsel %vm187, %v177, 0
        %v192 = vsel %vm187, %v178, 0
        %194 = vmatprep.subr.bf16.mxu0 0
        %195 = vmatpush1.bf16.msra.mxu0 0
        %196 = vmatprep.subr.bf16.mxu0 0
        %197 = vmatpush1.bf16.msra.mxu0 0
        %198 = vmatprep.subr.bf16.mxu0 0
        %199 = vmatpush1.bf16.msra.mxu0 0
        %200 = vmatprep.subr.bf16.mxu0 0
        %201 = vmatpush1.bf16.msra.mxu0 0
        %202 = vmatprep.subr.bf16.mxu0 0
        %203 = vmatpush1.bf16.msra.mxu0 0
        %204 = vmatprep.subr.bf16.mxu0 0
        %205 = vmatpush1.bf16.msra.mxu0 0
        %206 = vmatprep.subr.bf16.mxu0 0
        %207 = vmatpush1.bf16.msra.mxu0 0
        %208 = vmatprep.subr.bf16.mxu0 0
        %209 = vmatpush1.bf16.msra.mxu0 %v185
        %210 = vmatprep.subr.bf16.mxu0 0
        %211 = vmatpush2.bf16.msra.mxu0 0
        %212 = vmatprep.subr.bf16.mxu0 0
        %213 = vmatpush2.bf16.msra.mxu0 0
        %214 = vmatprep.subr.bf16.mxu0 0
        %215 = vmatpush2.bf16.msra.mxu0 0
        %216 = vmatprep.subr.bf16.mxu0 0
        %217 = vmatpush2.bf16.msra.mxu0 0
        %218 = vmatprep.subr.bf16.mxu0 0
        %219 = vmatpush2.bf16.msra.mxu0 0
        %220 = vmatprep.subr.bf16.mxu0 0
        %221 = vmatpush2.bf16.msra.mxu0 0
        %222 = vmatprep.subr.bf16.mxu0 0
        %223 = vmatpush2.bf16.msra.mxu0 0
        %224 = vmatprep.subr.bf16.mxu0 0
        %225 = vmatpush2.bf16.msra.mxu0 0
        %226 = vmatprep.mubr.bf16.mxu0 0
        %227 = vmatmul.mubr.bf16.gmra.mxu0 %v189
        %v228 = vpop.f32.mrf.mxu0
        %v229 = vadd.f32 0.0, %v228
        %v230 = vpop.f32.mrf.mxu0
        %v231 = vpop.f32.mrf.mxu0
        %v232 = vadd.f32 0.0, %v231
        %v233 = vpop.f32.mrf.mxu0
        %234 = vmatprep.mubr.bf16.mxu0 0
        %235 = vmatmul.mubr.bf16.gmra.mxu0 %v192
        %v236 = vpop.f32.mrf.mxu0
        %v237 = vadd.f32 0.0, %v236
        %v238 = vpop.f32.mrf.mxu0
        %v239 = vpop.f32.mrf.mxu0
        %v240 = vadd.f32 0.0, %v239
        %v241 = vpop.f32.mrf.mxu0
        %242 = vdwg.mxu0
        %v243 = vpack.c.bf16 %v232, %v229
        %v244 = vpack.c.bf16 %v240, %v237
        %v245 = vld [vmem:[%s1] sm:$0xf]
        %v246 = vld [vmem:[%s1 + $0x4] sm:$0xf]
        %v248 = vsel %vm187, %v245, 0
        %250 = vmatprep.subr.bf16.mxu0 0
        %251 = vmatpush1.bf16.msra.mxu0 0
        %252 = vmatprep.subr.bf16.mxu0 0
        %253 = vmatpush1.bf16.msra.mxu0 0
        %254 = vmatprep.subr.bf16.mxu0 0
        %255 = vmatpush1.bf16.msra.mxu0 0
        %256 = vmatprep.subr.bf16.mxu0 0
        %257 = vmatpush1.bf16.msra.mxu0 0
        %258 = vmatprep.subr.bf16.mxu0 0
        %259 = vmatpush1.bf16.msra.mxu0 0
        %260 = vmatprep.subr.bf16.mxu0 0
        %261 = vmatpush1.bf16.msra.mxu0 0
        %262 = vmatprep.subr.bf16.mxu0 0
        %263 = vmatpush1.bf16.msra.mxu0 0
        %264 = vmatprep.subr.bf16.mxu0 0
        %265 = vmatpush1.bf16.msra.mxu0 %v243
        %266 = vmatprep.subr.bf16.mxu0 0
        %267 = vmatpush2.bf16.msra.mxu0 0
        %268 = vmatprep.subr.bf16.mxu0 0
        %269 = vmatpush2.bf16.msra.mxu0 0
        %270 = vmatprep.subr.bf16.mxu0 0
        %271 = vmatpush2.bf16.msra.mxu0 0
        %272 = vmatprep.subr.bf16.mxu0 0
        %273 = vmatpush2.bf16.msra.mxu0 0
        %274 = vmatprep.subr.bf16.mxu0 0
        %275 = vmatpush2.bf16.msra.mxu0 0
        %276 = vmatprep.subr.bf16.mxu0 0
        %277 = vmatpush2.bf16.msra.mxu0 0
        %278 = vmatprep.subr.bf16.mxu0 0
        %279 = vmatpush2.bf16.msra.mxu0 0
        %280 = vmatprep.subr.bf16.mxu0 0
        %281 = vmatpush2.bf16.msra.mxu0 0
        %282 = vmatprep.mubr.bf16.mxu0 0
        %283 = vmatmul.mubr.bf16.gmra.mxu0 %v248
        %v284 = vpop.f32.mrf.mxu0
        %v285 = vadd.f32 0.0, %v284
        %v286 = vpop.f32.mrf.mxu0
        %v287 = vpop.f32.mrf.mxu0
        %v288 = vpop.f32.mrf.mxu0
        %289 = vdwg.mxu0
        %v291 = vsel %vm187, %v246, 0
        %293 = vmatprep.subr.bf16.mxu0 0
        %294 = vmatpush1.bf16.msra.mxu0 0
        %295 = vmatprep.subr.bf16.mxu0 0
        %296 = vmatpush1.bf16.msra.mxu0 0
        %297 = vmatprep.subr.bf16.mxu0 0
        %298 = vmatpush1.bf16.msra.mxu0 0
        %299 = vmatprep.subr.bf16.mxu0 0
        %300 = vmatpush1.bf16.msra.mxu0 0
        %301 = vmatprep.subr.bf16.mxu0 0
        %302 = vmatpush1.bf16.msra.mxu0 0
        %303 = vmatprep.subr.bf16.mxu0 0
        %304 = vmatpush1.bf16.msra.mxu0 0
        %305 = vmatprep.subr.bf16.mxu0 0
        %306 = vmatpush1.bf16.msra.mxu0 0
        %307 = vmatprep.subr.bf16.mxu0 0
        %308 = vmatpush1.bf16.msra.mxu0 %v244
        %309 = vmatprep.subr.bf16.mxu0 0
        %310 = vmatpush2.bf16.msra.mxu0 0
        %311 = vmatprep.subr.bf16.mxu0 0
        %312 = vmatpush2.bf16.msra.mxu0 0
        %313 = vmatprep.subr.bf16.mxu0 0
        %314 = vmatpush2.bf16.msra.mxu0 0
        %315 = vmatprep.subr.bf16.mxu0 0
        %316 = vmatpush2.bf16.msra.mxu0 0
        %317 = vmatprep.subr.bf16.mxu0 0
        %318 = vmatpush2.bf16.msra.mxu0 0
        %319 = vmatprep.subr.bf16.mxu0 0
        %320 = vmatpush2.bf16.msra.mxu0 0
        %321 = vmatprep.subr.bf16.mxu0 0
        %322 = vmatpush2.bf16.msra.mxu0 0
        %323 = vmatprep.subr.bf16.mxu0 0
        %324 = vmatpush2.bf16.msra.mxu0 0
        %325 = vmatprep.mubr.bf16.mxu0 0
        %326 = vmatmul.mubr.bf16.gmra.mxu0 %v291
        %v327 = vpop.f32.mrf.mxu0
        %v328 = vadd.f32 0.0, %v327
        %v329 = vpop.f32.mrf.mxu0
        %v330 = vpop.f32.mrf.mxu0
        %v331 = vpop.f32.mrf.mxu0
        %332 = vdwg.mxu0
        %333 = vst [vmem:[%s164] sm:$0xff] %v285
        %334 = vst [vmem:[%s164 + $0x8] sm:$0xff] %v328
        %s335 = sand.u32 %s93, 1
        %s336 = scalar_lea.sflag [#allocation3], %s335
        %s337 = sand.u32 %s93, 1
        %s338 = smul.addr %s337, 16
        %s339 = scalar_lea.vmem [#allocation2], %s338
        // Predicated region
        $region33: #{_crop_resize_call.1} parent=31 // pred_check
          %p340 = pneg %p103
        $region34: #{_crop_resize_call.1} parent=31 // pred_check_branch
          %342 = sbr.rel (%p340) target = $region36
        $region35: #{_crop_resize_call.1} parent=31 // pred_region
          %s343 = smul.u32 2, %s17
          %s345 = ssub.s32 256, 256
          %346 = vsyncadd %s336, %s345
          %s347 = smul.addr %s343, 128
          %s348 = scalar_lea.hbm %s3, %s347
          %s349 = sshll.u32 %s339, 4
          %s350 = int_to_ptr.vmem [resolvable:$true] %s349
          %355 = dma.vmem_to_hbm [thread:$0]  %s350, 256, %s348, %s336, 128, 128, 8
        $region36: #{_crop_resize_call.1} parent=31 // pred_fallthru
          _
      $region32: #{_crop_resize_call.1} parent=5 // pred_fallthru
        _
      %p356 = scmp.le.s32.totalorder 2, %s12
      // Predicated region
      $region37: #{_crop_resize_call.1} parent=5 // pred_check
        %p357 = pneg %p356
      $region38: #{_crop_resize_call.1} parent=5 // pred_check_branch
        %359 = sbr.rel (%p357) target = $region40
      $region39: #{_crop_resize_call.1} parent=5 // pred_region
        %s360 = ssub.s32 %s12, 2
        // Predicated region
        $region41: #{_crop_resize_call.1} parent=39 // pred_check
          %p361 = pneg %p109
        $region42: #{_crop_resize_call.1} parent=39 // pred_check_branch
          %363 = sbr.rel (%p361) target = $region44
        $region43: #{_crop_resize_call.1} parent=39 // pred_region
          %s364 = sand.u32 %s94, 1
          %s365 = scalar_lea.sflag [#allocation3], %s364
          %s366 = sand.u32 %s94, 1
          %s367 = smul.addr %s366, 16
          %s368 = scalar_lea.vmem [#allocation2], %s367
          %369 = dma.done %s365, 256
        $region44: #{_crop_resize_call.1} parent=39 // pred_fallthru
          _
      $region40: #{_crop_resize_call.1} parent=5 // pred_fallthru
        _
    $region6: #{_crop_resize_call.1} parent=1 // loop_footer
      %s16 = sadd.s32 1, %s12
    $region7: #{_crop_resize_call.1} parent=1 // loop_footer_branch
      %11 = sbr.rel target = $region3
    $region8: #{_crop_resize_call.1} parent=1 // loop_exit
      _
    %370 = vsyncpa [#allocation3], 1
    %s371 = scalar_lea.sflag [#allocation3], 1
    %372 = vsyncpa %s371, 1

</llo_original>
